<compile_context>
chip_gen: v7x
topology: tpu7x:2x2x1
jax: 0.10.0
libtpu: 0.0.40
codegen_flags: <defaults>
</compile_context>

<pallas_src>
import functools

import jax
import jax.numpy as jnp
from jax.experimental import pallas as pl
from jax.experimental.pallas import tpu as pltpu

_LANE = 128
_SUBLANE = 8


def _round_up(x, m):
    return ((x + m - 1) // m) * m


def _compute_total(tok, c, waT, ba, *, degree, inv_vocab):
    """Per-row scalar (mixed + pooled interactions) for one tile of tokens.

    tok: (R, 1)     f32 token ids (as float)
    c:   (D+1, Kp)  row d = coeffs[:, d] * term_weight (zero in padded lanes)
    waT: (Kp, Kp)   interaction_attention.weight.T (zero padded)
    ba:  (1, Kp)    interaction_attention.bias (zero padded)
    returns (R, 1) f32
    """
    x = tok * (2.0 * inv_vocab) - 1.0                     # token normalization
    R = tok.shape[0]
    Kp = c.shape[1]

    # Hoist the lane broadcast once (JAX does not CSE broadcast_in_dim).
    xb = jnp.broadcast_to(x, (R, Kp))

    # Horner on the VPU: ((c_D*x + c_{D-1})*x + ...)*x + c_0
    acc = c[degree:degree + 1, :] * xb + c[degree - 1:degree, :]
    for d in range(degree - 2, -1, -1):
        acc = acc * xb + c[d:d + 1, :]
    terms = acc                                            # (R, Kp); padded lanes == 0

    # SymbolicMixer('sum')
    mixed = jnp.sum(terms, axis=-1, keepdims=True)         # (R, 1)

    # Attention-weighted interaction pooling:
    #   sum_ij t_i t_j a_i a_j == (sum_i t_i a_i)^2
    # Invariant: padded lanes see sigmoid(0)=0.5 but multiply terms==0, so the
    # reduction is unaffected. Keep this when editing the padding.
    attn = jax.nn.sigmoid(
        jnp.dot(terms, waT, preferred_element_type=jnp.float32) + ba)   # (R, Kp)
    s = jnp.sum(terms * attn, axis=-1, keepdims=True)      # (R, 1)
    return mixed + s * s                                   # (R, 1)


def _kan_logits_kernel(tok_ref, c_ref, waT_ref, ba_ref, effw_ref, effb_ref,
                       out_ref, total_ref, *, degree, inv_vocab):
    # Grid = (row tiles, vocab tiles); vocab innermost. Compute the per-row
    # scalar once per row tile and reuse it for every vocab tile.
    @pl.when(pl.program_id(1) == 0)
    def _():
        total_ref[...] = _compute_total(
            tok_ref[...], c_ref[...], waT_ref[...], ba_ref[...],
            degree=degree, inv_vocab=inv_vocab)

    # stretch + out_proj fold to an affine map on the scalar 'total'.
    # TODO(synk): on v7x, if bundle dumps show the VALU slot saturating, move
    # this to the MXU as (R,2)@(2,v_tile) with LHS=[total, 1], RHS=[eff_w; eff_b].
    out_ref[...] = (total_ref[...] * effw_ref[...]
                    + effb_ref[...]).astype(out_ref.dtype)


def _kan_total_kernel(tok_ref, c_ref, waT_ref, ba_ref, out_ref, *,
                      degree, inv_vocab):
    out_ref[...] = _compute_total(
        tok_ref[...], c_ref[...], waT_ref[...], ba_ref[...],
        degree=degree, inv_vocab=inv_vocab).astype(out_ref.dtype)


def _fold_params(params, degree):
    """One-time parameter folding (outside the hot path)."""
    f32 = jnp.float32
    coeffs = params["coeffs"].astype(f32)                  # (K, D+1)
    tw = params["term_weight"].astype(f32)                 # (K,)
    K = coeffs.shape[0]
    Kp = _round_up(K, _LANE)

    scaled = (coeffs * tw[:, None]).T                      # (D+1, K)
    scaled = jnp.pad(scaled, ((0, 0), (0, Kp - K)))        # (D+1, Kp)

    waT = jnp.pad(params["attn_w"].astype(f32).T,
                  ((0, Kp - K), (0, Kp - K)))              # (Kp, Kp), pre-transposed
    ba = jnp.pad(params["attn_b"].astype(f32), (0, Kp - K))[None, :]   # (1, Kp)

    out_w = params["out_w"].astype(f32)                    # (V, 4)
    out_b = params["out_b"].astype(f32)                    # (V,)
    st_w = params["stretch_w"].astype(f32)                 # (4, 1)
    st_b = params["stretch_b"].astype(f32)                 # (4,)
    eff_w = (out_w @ st_w)[:, 0]                           # (V,)
    eff_b = out_w @ st_b + out_b                           # (V,)
    return scaled, waT, ba, eff_w, eff_b, Kp


def _pick_row_tile(N, row_tile):
    r = max(_SUBLANE, min(_round_up(row_tile, _SUBLANE), _round_up(N, _SUBLANE)))
    # Keep >= 2 steps on the row grid axis when there is enough work
    # (megacore sharding on 2-TC chips + pipelining).
    cap = _round_up(max(-(-N // 2), _SUBLANE), _SUBLANE)
    return min(r, cap)


def kan_symbolic_token_forward(token_ids, params, *, vocab_size, degree=3,
                               row_tile=2048, vocab_tile=1024,
                               out_dtype=jnp.float32, return_factored=False):
    """Pallas implementation of KANSymbolicTokenModel.forward (default flags)."""
    assert degree >= 1
    if token_ids.ndim == 1:
        token_ids = token_ids[:, None]
    B, T = token_ids.shape
    N = B * T
    f32 = jnp.float32

    scaled, waT, ba, eff_w, eff_b, Kp = _fold_params(params, degree)
    V = eff_w.shape[0]
    Dp1 = degree + 1
    out_itemsize = jnp.dtype(out_dtype).itemsize

    # ---- token rows, tiled over the (parallel) row axis ----
    r_tile = _pick_row_tile(N, row_tile)
    Np = _round_up(N, r_tile)
    tok = token_ids.reshape(N).astype(f32)
    tok = jnp.pad(tok, (0, Np - N))[:, None]               # (Np, 1)

    kernel_kw = dict(degree=degree, inv_vocab=1.0 / float(vocab_size))
    param_bytes = (Dp1 + 2 * Kp + _SUBLANE) * Kp * 4 * 2
    headroom = 4 << 20

    if return_factored:
        # Rank-1 factored output: logits[n, v] == total[n] * eff_w[v] + eff_b[v].
        # Skips the (N, V) logits writeback entirely; fuse the expansion (or
        # softmax / argmax / cross-entropy) in the consumer.
        vmem_bytes = (2 * r_tile * _LANE * 4               # token block (lane padded)
                      + 2 * r_tile * _LANE * out_itemsize  # (r_tile,1) out, lane padded
                      + param_bytes + headroom)
        total = pl.pallas_call(
            functools.partial(_kan_total_kernel, **kernel_kw),
            out_shape=jax.ShapeDtypeStruct((Np, 1), out_dtype),
            grid_spec=pltpu.PrefetchScalarGridSpec(
                num_scalar_prefetch=0,
                grid=(Np // r_tile,),
                in_specs=[
                    pl.BlockSpec((r_tile, 1), lambda i: (i, 0)),   # token ids
                    pl.BlockSpec((Dp1, Kp),   lambda i: (0, 0)),   # folded coeffs
                    pl.BlockSpec((Kp, Kp),    lambda i: (0, 0)),   # attn weight^T
                    pl.BlockSpec((1, Kp),     lambda i: (0, 0)),   # attn bias
                ],
                out_specs=pl.BlockSpec((r_tile, 1), lambda i: (i, 0)),
            ),
            compiler_params=pltpu.CompilerParams(
                dimension_semantics=("parallel",),
                vmem_limit_bytes=min(vmem_bytes, 100 << 20)),
        )(tok, scaled, waT, ba)
        total = total[:N, 0].reshape(B, T)
        return total, eff_w, eff_b

    # ---- vocab tiling (second grid axis, innermost, 'arbitrary') ----
    v_tile = min(_round_up(vocab_tile, _LANE), _round_up(V, _LANE))
    Vp = _round_up(V, v_tile)
    eff_w_p = jnp.pad(eff_w, (0, Vp - V))[None, :]          # (1, Vp)
    eff_b_p = jnp.pad(eff_b, (0, Vp - V))[None, :]          # (1, Vp)

    # VMEM budget (double-buffered blocks), incl. the 128x lane padding of the
    # (r_tile, 1) token block and the 'total' scratch.
    vmem_bytes = (2 * r_tile * _LANE * 4                    # token block
                  + 2 * r_tile * v_tile * out_itemsize      # output blocks
                  + r_tile * _LANE * 4                      # 'total' scratch
                  + 2 * 2 * _SUBLANE * v_tile * 4           # eff_w / eff_b blocks
                  + param_bytes + headroom)

    out = pl.pallas_call(
        functools.partial(_kan_logits_kernel, **kernel_kw),
        out_shape=jax.ShapeDtypeStruct((Np, Vp), out_dtype),
        grid_spec=pltpu.PrefetchScalarGridSpec(
            num_scalar_prefetch=0,
            grid=(Np // r_tile, Vp // v_tile),
            in_specs=[
                pl.BlockSpec((r_tile, 1), lambda i, j: (i, 0)),   # token ids
                pl.BlockSpec((Dp1, Kp),   lambda i, j: (0, 0)),   # folded coeffs
                pl.BlockSpec((Kp, Kp),    lambda i, j: (0, 0)),   # attn weight^T
                pl.BlockSpec((1, Kp),     lambda i, j: (0, 0)),   # attn bias
                pl.BlockSpec((1, v_tile), lambda i, j: (0, j)),   # eff_w tile
                pl.BlockSpec((1, v_tile), lambda i, j: (0, j)),   # eff_b tile
            ],
            out_specs=pl.BlockSpec((r_tile, v_tile), lambda i, j: (i, j)),
            scratch_shapes=[pltpu.VMEM((r_tile, 1), jnp.float32)],
        ),
        compiler_params=pltpu.CompilerParams(
            dimension_semantics=("parallel", "arbitrary"),
            vmem_limit_bytes=min(vmem_bytes, 100 << 20)),
    )(tok, scaled, waT, ba, eff_w_p, eff_b_p)

    if Np != N or Vp != V:
        # TODO(synk): this slice is an extra full read+write of the logits;
        # callers with N % r_tile == 0 and V % 128 == 0 avoid it entirely.
        out = out[:N, :V]
    return out.reshape(B, T, V)


def _reference(token_ids, params, *, vocab_size, degree=3):
    """Pure-JAX reference mirroring the PyTorch forward literally (float32)."""
    f32 = jnp.float32
    if token_ids.ndim == 1:
        token_ids = token_ids[:, None]
    B, T = token_ids.shape

    x = token_ids.astype(f32) / vocab_size * 2 - 1
    xf = x.reshape(-1)[:, None]                                       # (N, 1)
    X = jnp.stack([xf ** i for i in range(degree + 1)], axis=-1)      # (N, 1, D+1)
    poly = jnp.einsum('bnd,td->bnt', X, params["coeffs"].astype(f32))
    poly = poly[:, 0, :]
    terms_flat = poly * params["term_weight"].astype(f32)             # (N, K)
    terms = terms_flat.reshape(B, T, -1)

    mixed = terms.sum(-1)                                             # (B, T)

    interactions = terms_flat[:, :, None] * terms_flat[:, None, :]    # (N, K, K)
    attn = jax.nn.sigmoid(terms_flat @ params["attn_w"].astype(f32).T
                          + params["attn_b"].astype(f32))
    attn_mat = attn[:, :, None] * attn[:, None, :]
    pooled = (interactions * attn_mat).sum((1, 2)).reshape(B, T)
    mixed = mixed + pooled

    y = mixed[..., None]                                              # (B, T, 1)
    stretched = y @ params["stretch_w"].astype(f32).T + params["stretch_b"].astype(f32)
    logits = stretched @ params["out_w"].astype(f32).T + params["out_b"].astype(f32)
    return logits


if __name__ == "__main__":
    VOCAB = 256
    NUM_TERMS = 32
    DEGREE = 3
    B, T = 2, 8

    key = jax.random.PRNGKey(0)
    ks = jax.random.split(key, 9)
    params = {
        "coeffs": jax.random.normal(ks[0], (NUM_TERMS, DEGREE + 1), dtype=jnp.float32),
        "term_weight": jax.random.normal(ks[1], (NUM_TERMS,), dtype=jnp.float32),
        "attn_w": jax.random.normal(ks[2], (NUM_TERMS, NUM_TERMS), dtype=jnp.float32)
                  / jnp.sqrt(float(NUM_TERMS)),
        "attn_b": jax.random.normal(ks[3], (NUM_TERMS,), dtype=jnp.float32),
        "stretch_w": jax.random.normal(ks[4], (4, 1), dtype=jnp.float32),
        "stretch_b": jax.random.normal(ks[5], (4,), dtype=jnp.float32),
        "out_w": jax.random.normal(ks[6], (VOCAB, 4), dtype=jnp.float32) * 0.5,
        "out_b": jax.random.normal(ks[7], (VOCAB,), dtype=jnp.float32),
    }
    token_ids = jax.random.randint(ks[8], (B, T), 0, VOCAB)

    ref = _reference(token_ids, params, vocab_size=VOCAB, degree=DEGREE)

    # Fused logits kernel (default path).
    out = kan_symbolic_token_forward(token_ids, params, vocab_size=VOCAB, degree=DEGREE)
    out = jax.block_until_ready(out)
    assert out.shape == (B, T, VOCAB)
    rel_err = float(jnp.max(jnp.abs(out - ref)) / (jnp.max(jnp.abs(ref)) + 1e-6))
    assert rel_err < 1e-4, f"max relative error {rel_err}"

    # Rank-1 factored path (no (N, V) logits writeback).
    total, eff_w, eff_b = kan_symbolic_token_forward(
        token_ids, params, vocab_size=VOCAB, degree=DEGREE, return_factored=True)
    total = jax.block_until_ready(total)
    logits2 = total[..., None] * eff_w + eff_b
    rel_err2 = float(jnp.max(jnp.abs(logits2 - ref)) / (jnp.max(jnp.abs(ref)) + 1e-6))
    assert rel_err2 < 1e-4, f"factored max relative error {rel_err2}"

    print("KERNEL_OK")
</pallas_src>

<mosaic_0001>
module attributes {stable_mosaic.version = 11 : i64} {
  func.func @_kan_logits_kernel(%arg0: i32, %arg1: i32, %arg2: memref<8x1xf32, #tpu.memory_space<vmem>>, %arg3: memref<4x128xf32, #tpu.memory_space<vmem>>, %arg4: memref<128x128xf32, #tpu.memory_space<vmem>>, %arg5: memref<1x128xf32, #tpu.memory_space<vmem>>, %arg6: memref<1x256xf32, #tpu.memory_space<vmem>>, %arg7: memref<1x256xf32, #tpu.memory_space<vmem>>, %arg8: memref<8x256xf32, #tpu.memory_space<vmem>>, %arg9: memref<8x1xf32, #tpu.memory_space<vmem>>) attributes {dimension_semantics = [#tpu.dimension_semantics<parallel>, #tpu.dimension_semantics<arbitrary>], iteration_bounds = array<i64: 2, 1>, scalar_prefetch = 0 : i64, scratch_operands = 1 : i64, tpu.core_type = #tpu.core_type<tc>, window_params = [{transform_indices = @transform_0, window_bounds = array<i64: 8, 1>}, {pipeline_mode = #tpu.pipeline_mode<synchronous>, transform_indices = @transform_1, window_bounds = array<i64: 4, 128>}, {pipeline_mode = #tpu.pipeline_mode<synchronous>, transform_indices = @transform_2, window_bounds = array<i64: 128, 128>}, {pipeline_mode = #tpu.pipeline_mode<synchronous>, transform_indices = @transform_3, window_bounds = array<i64: 1, 128>}, {transform_indices = @transform_4, window_bounds = array<i64: 1, 256>}, {transform_indices = @transform_5, window_bounds = array<i64: 1, 256>}, {transform_indices = @transform_6, window_bounds = array<i64: 8, 256>}]} {
    %c0_i32 = arith.constant 0 : i32
    %0 = arith.cmpi eq, %arg1, %c0_i32 : i32
    %1 = arith.extui %0 : i1 to i32
    %c0_i32_0 = arith.constant 0 : i32
    %2 = arith.cmpi ne, %1, %c0_i32_0 : i32
    scf.if %2 {
      %c0_8 = arith.constant 0 : index
      %c0_9 = arith.constant 0 : index
      %12 = vector.load %arg2[%c0_8, %c0_9] : memref<8x1xf32, #tpu.memory_space<vmem>>, vector<8x1xf32>
      %c0_10 = arith.constant 0 : index
      %c0_11 = arith.constant 0 : index
      %13 = vector.load %arg3[%c0_10, %c0_11] : memref<4x128xf32, #tpu.memory_space<vmem>>, vector<4x128xf32>
      %c0_12 = arith.constant 0 : index
      %c0_13 = arith.constant 0 : index
      %14 = vector.load %arg4[%c0_12, %c0_13] : memref<128x128xf32, #tpu.memory_space<vmem>>, vector<128x128xf32>
      %c0_14 = arith.constant 0 : index
      %c0_15 = arith.constant 0 : index
      %15 = vector.load %arg5[%c0_14, %c0_15] : memref<1x128xf32, #tpu.memory_space<vmem>>, vector<1x128xf32>
      %cst = arith.constant 7.812500e-03 : f32
      %16 = vector.broadcast %cst : f32 to vector<8x1xf32>
      %17 = arith.mulf %12, %16 : vector<8x1xf32>
      %cst_16 = arith.constant 1.000000e+00 : f32
      %18 = vector.broadcast %cst_16 : f32 to vector<8x1xf32>
      %19 = arith.subf %17, %18 : vector<8x1xf32>
      %20 = vector.shape_cast %19 : vector<8x1xf32> to vector<8x1xf32>
      %21 = vector.broadcast %20 : vector<8x1xf32> to vector<8x128xf32>
      %22 = vector.extract_strided_slice %13 {offsets = [3, 0], sizes = [1, 128], strides = [1, 1]} : vector<4x128xf32> to vector<1x128xf32>
      %23 = vector.broadcast %22 : vector<1x128xf32> to vector<8x128xf32>
      %24 = arith.mulf %23, %21 : vector<8x128xf32>
      %25 = vector.extract_strided_slice %13 {offsets = [2, 0], sizes = [1, 128], strides = [1, 1]} : vector<4x128xf32> to vector<1x128xf32>
      %26 = vector.broadcast %25 : vector<1x128xf32> to vector<8x128xf32>
      %27 = arith.addf %24, %26 : vector<8x128xf32>
      %28 = arith.mulf %27, %21 : vector<8x128xf32>
      %29 = vector.extract_strided_slice %13 {offsets = [1, 0], sizes = [1, 128], strides = [1, 1]} : vector<4x128xf32> to vector<1x128xf32>
      %30 = vector.broadcast %29 : vector<1x128xf32> to vector<8x128xf32>
      %31 = arith.addf %28, %30 : vector<8x128xf32>
      %32 = arith.mulf %31, %21 : vector<8x128xf32>
      %33 = vector.extract_strided_slice %13 {offsets = [0, 0], sizes = [1, 128], strides = [1, 1]} : vector<4x128xf32> to vector<1x128xf32>
      %34 = vector.broadcast %33 : vector<1x128xf32> to vector<8x128xf32>
      %35 = arith.addf %32, %34 : vector<8x128xf32>
      %cst_17 = arith.constant dense<0.000000e+00> : vector<8xf32>
      %36 = vector.multi_reduction <add>, %35, %cst_17 [1] : vector<8x128xf32> to vector<8xf32>
      %37 = vector.shape_cast %36 : vector<8xf32> to vector<8x1xf32>
      %cst_18 = arith.constant dense<0.000000e+00> : vector<8x128xf32>
      %38 = tpu.matmul %35, %14, %cst_18 {dimension_numbers = #tpu.dot_dimension_numbers<[1], [0], [0], [1], [0, 0, 1, 1], [], []>} : vector<8x128xf32>, vector<128x128xf32>, vector<8x128xf32> -> vector<8x128xf32>
      %39 = vector.broadcast %15 : vector<1x128xf32> to vector<8x128xf32>
      %40 = arith.addf %38, %39 : vector<8x128xf32>
      %41 = arith.negf %40 : vector<8x128xf32>
      %42 = math.exp %41 : vector<8x128xf32>
      %cst_19 = arith.constant 1.000000e+00 : f32
      %43 = vector.broadcast %cst_19 : f32 to vector<8x128xf32>
      %44 = arith.addf %43, %42 : vector<8x128xf32>
      %45 = arith.divf %43, %44 : vector<8x128xf32>
      %46 = arith.mulf %35, %45 : vector<8x128xf32>
      %cst_20 = arith.constant dense<0.000000e+00> : vector<8xf32>
      %47 = vector.multi_reduction <add>, %46, %cst_20 [1] : vector<8x128xf32> to vector<8xf32>
      %48 = vector.shape_cast %47 : vector<8xf32> to vector<8x1xf32>
      %49 = arith.mulf %48, %48 : vector<8x1xf32>
      %50 = arith.addf %37, %49 : vector<8x1xf32>
      %c0_21 = arith.constant 0 : index
      %c0_22 = arith.constant 0 : index
      %51 = vector.load %arg9[%c0_21, %c0_22] : memref<8x1xf32, #tpu.memory_space<vmem>>, vector<8x1xf32>
      tpu.vector_store %arg9[%c0_21, %c0_22], %50 {strides = array<i32>} : memref<8x1xf32, #tpu.memory_space<vmem>>, vector<8x1xf32>,
    } else {
    }
    %c0 = arith.constant 0 : index
    %c0_1 = arith.constant 0 : index
    %3 = vector.load %arg9[%c0, %c0_1] : memref<8x1xf32, #tpu.memory_space<vmem>>, vector<8x1xf32>
    %c0_2 = arith.constant 0 : index
    %c0_3 = arith.constant 0 : index
    %4 = vector.load %arg6[%c0_2, %c0_3] : memref<1x256xf32, #tpu.memory_space<vmem>>, vector<1x256xf32>
    %5 = vector.broadcast %3 : vector<8x1xf32> to vector<8x256xf32>
    %6 = vector.broadcast %4 : vector<1x256xf32> to vector<8x256xf32>
    %7 = arith.mulf %5, %6 : vector<8x256xf32>
    %c0_4 = arith.constant 0 : index
    %c0_5 = arith.constant 0 : index
    %8 = vector.load %arg7[%c0_4, %c0_5] : memref<1x256xf32, #tpu.memory_space<vmem>>, vector<1x256xf32>
    %9 = vector.broadcast %8 : vector<1x256xf32> to vector<8x256xf32>
    %10 = arith.addf %7, %9 : vector<8x256xf32>
    %c0_6 = arith.constant 0 : index
    %c0_7 = arith.constant 0 : index
    %11 = vector.load %arg8[%c0_6, %c0_7] : memref<8x256xf32, #tpu.memory_space<vmem>>, vector<8x256xf32>
    tpu.vector_store %arg8[%c0_6, %c0_7], %10 {strides = array<i32>} : memref<8x256xf32, #tpu.memory_space<vmem>>, vector<8x256xf32>,
    return
  }
  func.func @transform_0(%arg0: i32, %arg1: i32) -> (i32, i32) {
    %c0_i32 = arith.constant 0 : i32
    %c0_i32_0 = arith.constant 0 : i32
    return %arg0, %c0_i32 : i32, i32
  }
  func.func @transform_1(%arg0: i32, %arg1: i32) -> (i32, i32) {
    %c0_i32 = arith.constant 0 : i32
    %c0_i32_0 = arith.constant 0 : i32
    %c0_i32_1 = arith.constant 0 : i32
    return %c0_i32, %c0_i32_0 : i32, i32
  }
  func.func @transform_2(%arg0: i32, %arg1: i32) -> (i32, i32) {
    %c0_i32 = arith.constant 0 : i32
    %c0_i32_0 = arith.constant 0 : i32
    %c0_i32_1 = arith.constant 0 : i32
    return %c0_i32, %c0_i32_0 : i32, i32
  }
  func.func @transform_3(%arg0: i32, %arg1: i32) -> (i32, i32) {
    %c0_i32 = arith.constant 0 : i32
    %c0_i32_0 = arith.constant 0 : i32
    %c0_i32_1 = arith.constant 0 : i32
    return %c0_i32, %c0_i32_0 : i32, i32
  }
  func.func @transform_4(%arg0: i32, %arg1: i32) -> (i32, i32) {
    %c0_i32 = arith.constant 0 : i32
    %c0_i32_0 = arith.constant 0 : i32
    return %c0_i32, %arg1 : i32, i32
  }
  func.func @transform_5(%arg0: i32, %arg1: i32) -> (i32, i32) {
    %c0_i32 = arith.constant 0 : i32
    %c0_i32_0 = arith.constant 0 : i32
    return %c0_i32, %arg1 : i32, i32
  }
  func.func @transform_6(%arg0: i32, %arg1: i32) -> (i32, i32) {
    %c0_i32 = arith.constant 0 : i32
    return %arg0, %arg1 : i32, i32
  }
}

</mosaic_0001>

<llo_original>
// kernel: tpu_custom_call.1
$region0: #{tpu_custom_call.1}
  #allocation0 [shape = 'u32[]', space=smem, size = 0x4, offset = 0x4, fixed_abs, tag = 'smem constant byte address 0x4 - core index']
  #allocation1 [shape = 'u32[144,128]{1,0:T(1,128)}', space=vmem, size = 0x12000, scoped, tag = 'internal scratch']
  #allocation2 [shape = 'f32[8,1]{1,0:T(8,128)}', space=vmem, size = 0x1000, scoped, tag = 'scratch operand']
  %s0 = inlined_call_operand.vmem [shape: f32[16,1], index: 0, kind: input, shape index: {}]
  %s1 = inlined_call_operand.vmem [shape: f32[4,128], index: 1, kind: input, shape index: {}]
  %s2 = inlined_call_operand.hbm [shape: f32[128,128], index: 2, kind: input, shape index: {}]
  %s3 = inlined_call_operand.vmem [shape: f32[1,128], index: 3, kind: input, shape index: {}]
  %s4 = inlined_call_operand.vmem [shape: f32[1,256], index: 4, kind: input, shape index: {}]
  %s5 = inlined_call_operand.vmem [shape: f32[1,256], index: 5, kind: input, shape index: {}]
  %s6 = inlined_call_operand.hbm [shape: f32[16,256], index: 6, kind: output, shape index: {}]
  %s7 = sld [smem:[#allocation0]]
  $region65: #{tpu_custom_call.1} parent=0
    _
  %s9 = ssub.s32 1, %s7
  %s10 = scalar_select 0, %s9, %s7
  $region1: #{tpu_custom_call.1} parent=0
    #allocation3 [shape = 'u8[65536]{0}', space=vmem, size = 0x10000, scoped, tag = 'input window, operand 2, single buffered']
    #allocation4 [shape = 's32[2]{0}', space=sflag, size = 0x8, scoped, tag = 'scoped memory for tpu_custom_call.1']
    #allocation5 [shape = 's32[2]{0}', space=sflag, size = 0x8, scoped, tag = 'scoped memory for tpu_custom_call.1']
    #allocation6 [shape = 'u8[16384]{0}', space=vmem, size = 0x4000, scoped, tag = 'output window, operand 0']
    %11 = vsyncpa [#allocation4], 0
    %12 = vsyncpa [#allocation5], 0
    %s13 = scalar_lea.sflag [#allocation5], 1
    %14 = vsyncpa %s13, 0
    loop: start=0, step=1, limit=4
    $region2: #{tpu_custom_call.1} parent=1 // loop_pre_header
      _
    $region3: #{tpu_custom_call.1} parent=1 // loop_header
      %s16 = sphi 0, %s20
      %p17 = scmp.ge.s32.totalorder %s16, 4
      %s23 = sphi 0, %s35
      %s24 = sphi 0, %s31
      %s25 = sphi 0, %s23
      %s26 = sphi 0, %s24
      %s27 = sphi 0, %s25
      %s28 = sphi 0, %s26
      %s38 = sphi 0, %s40
      %s41 = sphi 0, %s38
      %s42 = sphi 0, %s41
      %s58 = sphi 0, %s42
      %s62 = sphi 0, %s62
      %s64 = sphi 0, %s62
      %s65 = sphi 0, %s64
      %s79 = sphi 0, %s65
      %s83 = sphi 0, %s83
      %s85 = sphi 0, %s83
      %s86 = sphi 0, %s85
      %s100 = sphi 0, %s86
      %s104 = sphi 0, %s104
      %s106 = sphi 0, %s104
      %s107 = sphi 0, %s106
      %s121 = sphi 0, %s107
      %s127 = sphi 0, %s129
      %s130 = sphi 0, %s127
      %s131 = sphi 0, %s130
      %s147 = sphi 0, %s131
      %s153 = sphi 0, %s155
      %s156 = sphi 0, %s153
      %s157 = sphi 0, %s156
      %s173 = sphi 0, %s157
      %s181 = sphi 0, %s183
      %s184 = sphi 0, %s181
      %s185 = sphi 0, %s184
      %s201 = sphi 0, %s185
    $region4: #{tpu_custom_call.1} parent=1 // loop_header_branch
      %19 = sbr.rel (%p17) target = $region8
    $region5: #{tpu_custom_call.1} parent=1 // loop_body
      %s21 = ssub.s32 %s16, 1
      %s22 = ssub.s32 %s16, 2
      %s29 = sadd.s32 1, %s24
      %p30 = scmp.ge.s32.totalorder %s29, 1
      %s31 = scalar_select %p30, 0, %s29
      %s32 = sadd.s32 1, %s23
      %s33 = scalar_select %p30, %s32, %s23
      %p34 = scmp.ge.s32.totalorder %s33, 2
      %s35 = scalar_select %p34, 0, %s33
      %s36 = ssub.s32 %s23, %s35
      %p37 = scmp.eq.s32.totalorder %s36, 0
      %s39 = sadd.s32 %s38, 1
      %s40 = scalar_select %p37, %s38, %s39
      %p43 = pneg %p37
      %p44 = scmp.eq.s32.totalorder %s16, 1
      %p45 = por %p43, %p44
      %p46 = scmp.ne.s32.totalorder %s38, %s41
      %p47 = scmp.eq.s32.totalorder %s16, 0
      %p48 = por %p46, %p47
      %p49 = scmp.ne.s32.totalorder %s38, %s41
      %p50 = scmp.eq.s32.totalorder %s21, 1
      %p51 = por %p49, %p50
      %p52 = scmp.ne.s32.totalorder %s41, %s42
      %p53 = scmp.eq.s32.totalorder %s21, 0
      %p54 = por %p52, %p53
      %p55 = scmp.ne.s32.totalorder %s41, %s42
      %p56 = scmp.eq.s32.totalorder %s22, 1
      %p57 = por %p55, %p56
      %p59 = scmp.ne.s32.totalorder %s42, %s58
      %p60 = scmp.eq.s32.totalorder %s22, 0
      %p61 = por %p59, %p60
      %s63 = sadd.s32 %s62, 1
      %p66 = scmp.eq.s32.totalorder %s16, 1
      %p67 = scmp.ne.s32.totalorder %s62, %s64
      %p68 = scmp.eq.s32.totalorder %s16, 0
      %p69 = por %p67, %p68
      %p70 = scmp.ne.s32.totalorder %s62, %s64
      %p71 = scmp.eq.s32.totalorder %s21, 1
      %p72 = por %p70, %p71
      %p73 = scmp.ne.s32.totalorder %s64, %s65
      %p74 = scmp.eq.s32.totalorder %s21, 0
      %p75 = por %p73, %p74
      %p76 = scmp.ne.s32.totalorder %s64, %s65
      %p77 = scmp.eq.s32.totalorder %s22, 1
      %p78 = por %p76, %p77
      %p80 = scmp.ne.s32.totalorder %s65, %s79
      %p81 = scmp.eq.s32.totalorder %s22, 0
      %p82 = por %p80, %p81
      %s84 = sadd.s32 %s83, 1
      %p87 = scmp.eq.s32.totalorder %s16, 1
      %p88 = scmp.ne.s32.totalorder %s83, %s85
      %p89 = scmp.eq.s32.totalorder %s16, 0
      %p90 = por %p88, %p89
      %p91 = scmp.ne.s32.totalorder %s83, %s85
      %p92 = scmp.eq.s32.totalorder %s21, 1
      %p93 = por %p91, %p92
      %p94 = scmp.ne.s32.totalorder %s85, %s86
      %p95 = scmp.eq.s32.totalorder %s21, 0
      %p96 = por %p94, %p95
      %p97 = scmp.ne.s32.totalorder %s85, %s86
      %p98 = scmp.eq.s32.totalorder %s22, 1
      %p99 = por %p97, %p98
      %p101 = scmp.ne.s32.totalorder %s86, %s100
      %p102 = scmp.eq.s32.totalorder %s22, 0
      %p103 = por %p101, %p102
      %s105 = sadd.s32 %s104, 1
      %p108 = scmp.eq.s32.totalorder %s16, 1
      %p109 = scmp.ne.s32.totalorder %s104, %s106
      %p110 = scmp.eq.s32.totalorder %s16, 0
      %p111 = por %p109, %p110
      %p112 = scmp.ne.s32.totalorder %s104, %s106
      %p113 = scmp.eq.s32.totalorder %s21, 1
      %p114 = por %p112, %p113
      %p115 = scmp.ne.s32.totalorder %s106, %s107
      %p116 = scmp.eq.s32.totalorder %s21, 0
      %p117 = por %p115, %p116
      %p118 = scmp.ne.s32.totalorder %s106, %s107
      %p119 = scmp.eq.s32.totalorder %s22, 1
      %p120 = por %p118, %p119
      %p122 = scmp.ne.s32.totalorder %s107, %s121
      %p123 = scmp.eq.s32.totalorder %s22, 0
      %p124 = por %p122, %p123
      %s125 = ssub.s32 %s24, %s31
      %p126 = scmp.eq.s32.totalorder %s125, 0
      %s128 = sadd.s32 %s127, 1
      %s129 = scalar_select %p126, %s127, %s128
      %p132 = pneg %p126
      %p133 = scmp.eq.s32.totalorder %s16, 1
      %p134 = por %p132, %p133
      %p135 = scmp.ne.s32.totalorder %s127, %s130
      %p136 = scmp.eq.s32.totalorder %s16, 0
      %p137 = por %p135, %p136
      %p138 = scmp.ne.s32.totalorder %s127, %s130
      %p139 = scmp.eq.s32.totalorder %s21, 1
      %p140 = por %p138, %p139
      %p141 = scmp.ne.s32.totalorder %s130, %s131
      %p142 = scmp.eq.s32.totalorder %s21, 0
      %p143 = por %p141, %p142
      %p144 = scmp.ne.s32.totalorder %s130, %s131
      %p145 = scmp.eq.s32.totalorder %s22, 1
      %p146 = por %p144, %p145
      %p148 = scmp.ne.s32.totalorder %s131, %s147
      %p149 = scmp.eq.s32.totalorder %s22, 0
      %p150 = por %p148, %p149
      %s151 = ssub.s32 %s24, %s31
      %p152 = scmp.eq.s32.totalorder %s151, 0
      %s154 = sadd.s32 %s153, 1
      %s155 = scalar_select %p152, %s153, %s154
      %p158 = pneg %p152
      %p159 = scmp.eq.s32.totalorder %s16, 1
      %p160 = por %p158, %p159
      %p161 = scmp.ne.s32.totalorder %s153, %s156
      %p162 = scmp.eq.s32.totalorder %s16, 0
      %p163 = por %p161, %p162
      %p164 = scmp.ne.s32.totalorder %s153, %s156
      %p165 = scmp.eq.s32.totalorder %s21, 1
      %p166 = por %p164, %p165
      %p167 = scmp.ne.s32.totalorder %s156, %s157
      %p168 = scmp.eq.s32.totalorder %s21, 0
      %p169 = por %p167, %p168
      %p170 = scmp.ne.s32.totalorder %s156, %s157
      %p171 = scmp.eq.s32.totalorder %s22, 1
      %p172 = por %p170, %p171
      %p174 = scmp.ne.s32.totalorder %s157, %s173
      %p175 = scmp.eq.s32.totalorder %s22, 0
      %p176 = por %p174, %p175
      %s177 = ssub.s32 %s23, %s35
      %s178 = ssub.s32 %s24, %s31
      %s179 = sor.u32 %s177, %s178
      %p180 = scmp.eq.s32.totalorder %s179, 0
      %s182 = sadd.s32 %s181, 1
      %s183 = scalar_select %p180, %s181, %s182
      %p186 = pneg %p180
      %p187 = scmp.eq.s32.totalorder %s16, 1
      %p188 = por %p186, %p187
      %p189 = scmp.ne.s32.totalorder %s181, %s184
      %p190 = scmp.eq.s32.totalorder %s16, 0
      %p191 = por %p189, %p190
      %p192 = scmp.ne.s32.totalorder %s181, %s184
      %p193 = scmp.eq.s32.totalorder %s21, 1
      %p194 = por %p192, %p193
      %p195 = scmp.ne.s32.totalorder %s184, %s185
      %p196 = scmp.eq.s32.totalorder %s21, 0
      %p197 = por %p195, %p196
      %p198 = scmp.ne.s32.totalorder %s184, %s185
      %p199 = scmp.eq.s32.totalorder %s22, 1
      %p200 = por %p198, %p199
      %p202 = scmp.ne.s32.totalorder %s185, %s201
      %p203 = scmp.eq.s32.totalorder %s22, 0
      %p204 = por %p202, %p203
      %p205 = scmp.le.s32.totalorder 1, %s16
      %p206 = scmp.lt.s32.totalorder %s16, 3
      %p207 = pnand %p205, %p206
      %p208 = pneg %p207
      // Predicated region
      $region9: #{tpu_custom_call.1} parent=5 // pred_check
        _
      $region10: #{tpu_custom_call.1} parent=5 // pred_check_branch
        %210 = sbr.rel (%p207) target = $region12
      $region11: #{tpu_custom_call.1} parent=5 // pred_region
        %s211 = ssub.s32 %s16, 1
        // Predicated region
        $region13: #{tpu_custom_call.1} parent=11 // pred_check
          %p212 = pneg %p75
        $region14: #{tpu_custom_call.1} parent=11 // pred_check_branch
          %214 = sbr.rel (%p212) target = $region16
        $region15: #{tpu_custom_call.1} parent=11 // pred_region
          _
        $region16: #{tpu_custom_call.1} parent=11 // pred_fallthru
          _
        // Predicated region
        $region17: #{tpu_custom_call.1} parent=11 // pred_check
          %p215 = pneg %p96
        $region18: #{tpu_custom_call.1} parent=11 // pred_check_branch
          %217 = sbr.rel (%p215) target = $region20
        $region19: #{tpu_custom_call.1} parent=11 // pred_region
          %s219 = ssub.s32 2048, 2048
          %220 = vsyncadd [#allocation4], %s219
          %s221 = sshll.u32 [#allocation3], 4
          %s222 = int_to_ptr.vmem [resolvable:$true] %s221
          %227 = dma.hbm_to_vmem [thread:$0]  %s2, 2048, %s222, [#allocation4], 128, 128, 8
        $region20: #{tpu_custom_call.1} parent=11 // pred_fallthru
          _
        // Predicated region
        $region21: #{tpu_custom_call.1} parent=11 // pred_check
          %p228 = pneg %p117
        $region22: #{tpu_custom_call.1} parent=11 // pred_check_branch
          %230 = sbr.rel (%p228) target = $region24
        $region23: #{tpu_custom_call.1} parent=11 // pred_region
          _
        $region24: #{tpu_custom_call.1} parent=11 // pred_fallthru
          _
        // Predicated region
        $region25: #{tpu_custom_call.1} parent=11 // pred_check
          %p231 = pneg %p143
        $region26: #{tpu_custom_call.1} parent=11 // pred_check_branch
          %233 = sbr.rel (%p231) target = $region28
        $region27: #{tpu_custom_call.1} parent=11 // pred_region
          %s234 = smul.u32 2, %s26
          %p235 = scmp.lt.s32.totalorder %s234, 1
          %s236 = scalar_select %p235, %s234, 1
          %s237 = scalar_lea.vmem %s4, %s236
          %s238 = smul.u32 2, %s26
        $region28: #{tpu_custom_call.1} parent=11 // pred_fallthru
          _
        // Predicated region
        $region29: #{tpu_custom_call.1} parent=11 // pred_check
          %p239 = pneg %p169
        $region30: #{tpu_custom_call.1} parent=11 // pred_check_branch
          %241 = sbr.rel (%p239) target = $region32
        $region31: #{tpu_custom_call.1} parent=11 // pred_region
          %s242 = smul.u32 2, %s26
          %p243 = scmp.lt.s32.totalorder %s242, 1
          %s244 = scalar_select %p243, %s242, 1
          %s245 = scalar_lea.vmem %s5, %s244
          %s246 = smul.u32 2, %s26
        $region32: #{tpu_custom_call.1} parent=11 // pred_fallthru
          _
      $region12: #{tpu_custom_call.1} parent=5 // pred_fallthru
        _
      %p247 = scmp.lt.s32.totalorder %s16, 2
      // Predicated region
      $region33: #{tpu_custom_call.1} parent=5 // pred_check
        %p248 = pneg %p247
      $region34: #{tpu_custom_call.1} parent=5 // pred_check_branch
        %250 = sbr.rel (%p248) target = $region36
      $region35: #{tpu_custom_call.1} parent=5 // pred_region
        // Predicated region
        $region37: #{tpu_custom_call.1} parent=35 // pred_check
          %p251 = pneg %p48
        $region38: #{tpu_custom_call.1} parent=35 // pred_check_branch
          %253 = sbr.rel (%p251) target = $region40
        $region39: #{tpu_custom_call.1} parent=35 // pred_region
          %p254 = scmp.lt.s32.totalorder %s23, 1
          %s255 = scalar_select %p254, %s23, 1
          %s256 = smul.addr %s255, 8
          %s257 = scalar_lea.vmem %s0, %s256
        $region40: #{tpu_custom_call.1} parent=35 // pred_fallthru
          _
      $region36: #{tpu_custom_call.1} parent=5 // pred_fallthru
        _
      %p258 = scmp.le.s32.totalorder 1, %s16
      %p259 = scmp.lt.s32.totalorder %s16, 3
      %p260 = pnand %p258, %p259
      %p261 = pneg %p260
      // Predicated region
      $region41: #{tpu_custom_call.1} parent=5 // pred_check
        _
      $region42: #{tpu_custom_call.1} parent=5 // pred_check_branch
        %263 = sbr.rel (%p260) target = $region44
      $region43: #{tpu_custom_call.1} parent=5 // pred_region
        %s264 = ssub.s32 %s16, 1
        // Predicated region
        $region45: #{tpu_custom_call.1} parent=43 // pred_check
          %p265 = pneg %p96
        $region46: #{tpu_custom_call.1} parent=43 // pred_check_branch
          %267 = sbr.rel (%p265) target = $region48
        $region47: #{tpu_custom_call.1} parent=43 // pred_region
          %268 = dma.done [#allocation4], 2048
        $region48: #{tpu_custom_call.1} parent=43 // pred_fallthru
          _
        %p269 = scmp.lt.s32.totalorder %s25, 1
        %s270 = scalar_select %p269, %s25, 1
        %s271 = smul.addr %s270, 8
        %s272 = scalar_lea.vmem %s0, %s271
        %p273 = pneg %p54
        %p274 = pneg %p51
        %p275 = pneg %p75
        %p276 = pneg %p72
        %p277 = pneg %p96
        %p278 = pneg %p93
        %p279 = pneg %p117
        %p280 = pneg %p114
        %s281 = smul.u32 2, %s26
        %p282 = scmp.lt.s32.totalorder %s281, 1
        %s283 = scalar_select %p282, %s281, 1
        %s284 = scalar_lea.vmem %s4, %s283
        %p285 = pneg %p143
        %p286 = pneg %p140
        %s287 = smul.u32 2, %s26
        %p288 = scmp.lt.s32.totalorder %s287, 1
        %s289 = scalar_select %p288, %s287, 1
        %s290 = scalar_lea.vmem %s5, %s289
        %p291 = pneg %p169
        %p292 = pneg %p166
        %p293 = pneg %p197
        %p294 = pneg %p194
        %s295 = sand.u32 %s184, 1
        %s296 = scalar_lea.sflag [#allocation5], %s295
        %s297 = sand.u32 %s184, 1
        %s298 = smul.addr %s297, 16
        %s299 = scalar_lea.vmem [#allocation6], %s298
        %p300 = scmp.lt.s32.totalorder %s25, 1
        %s301 = scalar_select %p300, %s25, 1
        %s302 = smul.addr %s301, 8
        %s303 = scalar_lea.vmem %s0, %s302
        %s304 = smul.u32 2, %s26
        %p305 = scmp.lt.s32.totalorder %s304, 1
        %s306 = scalar_select %p305, %s304, 1
        %s307 = scalar_lea.vmem %s4, %s306
        %s308 = smul.u32 2, %s26
        %s309 = smul.u32 2, %s26
        %p310 = scmp.lt.s32.totalorder %s309, 1
        %s311 = scalar_select %p310, %s309, 1
        %s312 = scalar_lea.vmem %s5, %s311
        %s313 = smul.u32 2, %s26
        %s314 = smul.u32 2, %s26
        %p315 = scmp.eq.s32.totalorder %s26, 0
        // Predicated region
        $region49: #{tpu_custom_call.1} parent=43 // pred_check
          %p316 = pneg %p315
        $region50: #{tpu_custom_call.1} parent=43 // pred_check_branch
          %318 = sbr.rel (%p316) target = $region52
        $region51: #{tpu_custom_call.1} parent=43 // pred_region
          %v319 = vld [vmem:[%s303] sm:$0xff]
          %v320 = vld [vmem:[%s1] sm:$0xf]
          %v321 = vld [vmem:[#allocation3] sm:$0xff]
          %v322 = vld [vmem:[#allocation3 + $0x8] sm:$0xff]
          %v323 = vld [vmem:[#allocation3 + $0x10] sm:$0xff]
          %v324 = vld [vmem:[#allocation3 + $0x18] sm:$0xff]
          %v325 = vld [vmem:[#allocation3 + $0x20] sm:$0xff]
          %v326 = vld [vmem:[#allocation3 + $0x28] sm:$0xff]
          %v327 = vld [vmem:[#allocation3 + $0x30] sm:$0xff]
          %v328 = vld [vmem:[#allocation3 + $0x38] sm:$0xff]
          %v329 = vld [vmem:[#allocation3 + $0x40] sm:$0xff]
          %v330 = vld [vmem:[#allocation3 + $0x48] sm:$0xff]
          %v331 = vld [vmem:[#allocation3 + $0x50] sm:$0xff]
          %v332 = vld [vmem:[#allocation3 + $0x58] sm:$0xff]
          %v333 = vld [vmem:[#allocation3 + $0x60] sm:$0xff]
          %v334 = vld [vmem:[#allocation3 + $0x68] sm:$0xff]
          %v335 = vld [vmem:[#allocation3 + $0x70] sm:$0xff]
          %v336 = vld [vmem:[#allocation3 + $0x78] sm:$0xff]
          %v337 = vld [vmem:[%s3] sm:$0x1]
          %v338 = vmul.f32 %v319, 0.0078125
          %v339 = vsub.f32 %v338, 1.0
          %341 = vset.pattern.permute.xlu0 0
          %342 = vperm.xlu0 %341, %v339
          %v343 = vpop.permute.xlu0 %342
          %v345 = vlaneseq
          %v346 = vshrl.u32 %v345, 7
          %v347 = vsub.s32 3, %v346
          %v348 = vrot.slane %v320, %v347
          %v349 = vmul.f32 %v348, %v343
          %v350 = vlaneseq
          %v351 = vshrl.u32 %v350, 7
          %v352 = vsub.s32 2, %v351
          %v353 = vrot.slane %v320, %v352
          %v354 = vadd.f32 %v349, %v353
          %v355 = vmul.f32 %v354, %v343
          %v356 = vlaneseq
          %v357 = vshrl.u32 %v356, 7
          %v358 = vsub.s32 1, %v357
          %v359 = vrot.slane %v320, %v358
          %v360 = vadd.f32 %v355, %v359
          %v361 = vmul.f32 %v360, %v343
          %v362 = vlaneseq
          %v363 = vshrl.u32 %v362, 7
          %v364 = vsub.s32 0, %v363
          %v365 = vrot.slane %v320, %v364
          %v366 = vadd.f32 %v361, %v365
          %367 = vadd.xlane.f32.xlu0 %v366
          %v368 = vpop.xlane.xlu0 %367
          %v370 = vlaneseq
          %v371 = vshrl.u32 %v370, 7
          %v372 = vsub.s32 0, %v371
          %v373 = vrot.slane %v337, %v372
          %375 = vmatprep.subr.mxu0 0.0
          %376 = vmatpush1.msra.mxu0 %v321
          %377 = vmatprep.subr.mxu0 0.0
          %378 = vmatpush1.msra.mxu0 %v322
          %379 = vmatprep.subr.mxu0 0.0
          %380 = vmatpush1.msra.mxu0 %v323
          %381 = vmatprep.subr.mxu0 0.0
          %382 = vmatpush1.msra.mxu0 %v324
          %383 = vmatprep.subr.mxu0 0.0
          %384 = vmatpush1.msra.mxu0 %v325
          %385 = vmatprep.subr.mxu0 0.0
          %386 = vmatpush1.msra.mxu0 %v326
          %387 = vmatprep.subr.mxu0 0.0
          %388 = vmatpush1.msra.mxu0 %v327
          %389 = vmatprep.subr.mxu0 0.0
          %390 = vmatpush1.msra.mxu0 %v328
          %391 = vmatprep.subr.mxu0 0.0
          %392 = vmatpush1.msra.mxu0 %v329
          %393 = vmatprep.subr.mxu0 0.0
          %394 = vmatpush1.msra.mxu0 %v330
          %395 = vmatprep.subr.mxu0 0.0
          %396 = vmatpush1.msra.mxu0 %v331
          %397 = vmatprep.subr.mxu0 0.0
          %398 = vmatpush1.msra.mxu0 %v332
          %399 = vmatprep.subr.mxu0 0.0
          %400 = vmatpush1.msra.mxu0 %v333
          %401 = vmatprep.subr.mxu0 0.0
          %402 = vmatpush1.msra.mxu0 %v334
          %403 = vmatprep.subr.mxu0 0.0
          %404 = vmatpush1.msra.mxu0 %v335
          %405 = vmatprep.subr.mxu0 0.0
          %406 = vmatpush1.msra.mxu0 %v336
          %407 = vmatprep.subr.mxu0 0.0
          %408 = vmatpush1.msra.mxu0 0.0
          %409 = vmatprep.subr.mxu0 0.0
          %410 = vmatpush1.msra.mxu0 0.0
          %411 = vmatprep.subr.mxu0 0.0
          %412 = vmatpush1.msra.mxu0 0.0
          %413 = vmatprep.subr.mxu0 0.0
          %414 = vmatpush1.msra.mxu0 0.0
          %415 = vmatprep.subr.mxu0 0.0
          %416 = vmatpush1.msra.mxu0 0.0
          %417 = vmatprep.subr.mxu0 0.0
          %418 = vmatpush1.msra.mxu0 0.0
          %419 = vmatprep.subr.mxu0 0.0
          %420 = vmatpush1.msra.mxu0 0.0
          %421 = vmatprep.subr.mxu0 0.0
          %422 = vmatpush1.msra.mxu0 0.0
          %423 = vmatprep.subr.mxu0 0.0
          %424 = vmatpush1.msra.mxu0 0.0
          %425 = vmatprep.subr.mxu0 0.0
          %426 = vmatpush1.msra.mxu0 0.0
          %427 = vmatprep.subr.mxu0 0.0
          %428 = vmatpush1.msra.mxu0 0.0
          %429 = vmatprep.subr.mxu0 0.0
          %430 = vmatpush1.msra.mxu0 0.0
          %431 = vmatprep.subr.mxu0 0.0
          %432 = vmatpush1.msra.mxu0 0.0
          %433 = vmatprep.subr.mxu0 0.0
          %434 = vmatpush1.msra.mxu0 0.0
          %435 = vmatprep.subr.mxu0 0.0
          %436 = vmatpush1.msra.mxu0 0.0
          %437 = vmatprep.subr.mxu0 0.0
          %438 = vmatpush1.msra.mxu0 0.0
          %439 = vmatprep.mubr.f32.mxu0 0.0
          %440 = vmatmul.mubr.f32.gmra.mrb[0].mxu0 %v366
          %v441 = vpop.f32.mrb[0].mxu0
          %v442 = vadd.f32 %v373, %v441
          %v443 = vpop.f32.mrb[0].mxu0
          %444 = vdwg.mxu0
          %v445 = vxor.u32 %v442, 2147483648
          %v446 = vmul.f32 %v445, 1.442695
          %v447 = vpow.pop %v446
          %v448 = vadd.f32 %v447, 1.0
          %v449 = vrcp.pop %v448
          %v450 = vmul.f32 1.0, %v449
          %v451 = vmul.f32 %v366, %v450
          %452 = vadd.xlane.f32.xlu0 %v451
          %v453 = vpop.xlane.xlu0 %452
          %v454 = vmul.f32 %v453, %v453
          %v455 = vadd.f32 %v368, %v454
          %vm456 = vcmask 7168
          %457 = vst.msk [vmem:[#allocation2] sm:$0xff] %vm456, %v455
        $region52: #{tpu_custom_call.1} parent=43 // pred_fallthru
          _
        %v458 = vld [vmem:[#allocation2] sm:$0xff]
        %v459 = vld [vmem:[%s307] sm:$0x3]
        %461 = vset.pattern.permute.xlu0 0
        %462 = vperm.xlu0 %461, %v458
        %v463 = vpop.permute.xlu0 %462
        %v466 = vlaneseq
        %v467 = vshrl.u32 %v466, 7
        %v468 = vsub.s32 0, %v467
        %v469 = vrot.slane %v459, %v468
        %v470 = vlaneseq
        %v471 = vshrl.u32 %v470, 7
        %v472 = vsub.s32 1, %v471
        %v473 = vrot.slane %v459, %v472
        %v476 = vmul.f32 %v463, %v469
        %v477 = vmul.f32 %v463, %v473
        %v478 = vld [vmem:[%s312] sm:$0x3]
        %v480 = vlaneseq
        %v481 = vshrl.u32 %v480, 7
        %v482 = vsub.s32 0, %v481
        %v483 = vrot.slane %v478, %v482
        %v484 = vlaneseq
        %v485 = vshrl.u32 %v484, 7
        %v486 = vsub.s32 1, %v485
        %v487 = vrot.slane %v478, %v486
        %v490 = vadd.f32 %v476, %v483
        %v491 = vadd.f32 %v477, %v487
        %492 = vst [vmem:[%s299] sm:$0xff] %v490
        %493 = vst [vmem:[%s299 + $0x8] sm:$0xff] %v491
        %s494 = sand.u32 %s184, 1
        %s495 = scalar_lea.sflag [#allocation5], %s494
        %s496 = sand.u32 %s184, 1
        %s497 = smul.addr %s496, 16
        %s498 = scalar_lea.vmem [#allocation6], %s497
        // Predicated region
        $region53: #{tpu_custom_call.1} parent=43 // pred_check
          %p499 = pneg %p194
        $region54: #{tpu_custom_call.1} parent=43 // pred_check_branch
          %501 = sbr.rel (%p499) target = $region56
        $region55: #{tpu_custom_call.1} parent=43 // pred_region
          %s502 = smul.u32 2, %s26
          %s504 = ssub.s32 256, 256
          %505 = vsyncadd %s495, %s504
          %s506 = smul.addr %s25, 2
          %s507 = sadd.s32 %s502, %s506
          %s508 = smul.addr %s507, 128
          %s509 = scalar_lea.hbm %s6, %s508
          %s511 = sshll.u32 %s498, 4
          %s512 = int_to_ptr.vmem [resolvable:$true] %s511
          %514 = dma.vmem_to_hbm [thread:$0]  %s512, 256, %s509, %s495
        $region56: #{tpu_custom_call.1} parent=43 // pred_fallthru
          _
      $region44: #{tpu_custom_call.1} parent=5 // pred_fallthru
        _
      %p515 = scmp.le.s32.totalorder 2, %s16
      // Predicated region
      $region57: #{tpu_custom_call.1} parent=5 // pred_check
        %p516 = pneg %p515
      $region58: #{tpu_custom_call.1} parent=5 // pred_check_branch
        %518 = sbr.rel (%p516) target = $region60
      $region59: #{tpu_custom_call.1} parent=5 // pred_region
        %s519 = ssub.s32 %s16, 2
        // Predicated region
        $region61: #{tpu_custom_call.1} parent=59 // pred_check
          %p520 = pneg %p200
        $region62: #{tpu_custom_call.1} parent=59 // pred_check_branch
          %522 = sbr.rel (%p520) target = $region64
        $region63: #{tpu_custom_call.1} parent=59 // pred_region
          %s523 = sand.u32 %s185, 1
          %s524 = scalar_lea.sflag [#allocation5], %s523
          %s525 = sand.u32 %s185, 1
          %s526 = smul.addr %s525, 16
          %s527 = scalar_lea.vmem [#allocation6], %s526
          %528 = dma.done %s524, 256
        $region64: #{tpu_custom_call.1} parent=59 // pred_fallthru
          _
      $region60: #{tpu_custom_call.1} parent=5 // pred_fallthru
        _
    $region6: #{tpu_custom_call.1} parent=1 // loop_footer
      %s20 = sadd.s32 1, %s16
    $region7: #{tpu_custom_call.1} parent=1 // loop_footer_branch
      %15 = sbr.rel target = $region3
    $region8: #{tpu_custom_call.1} parent=1 // loop_exit
      _
    %529 = vsyncpa [#allocation4], 1
    %s530 = scalar_lea.sflag [#allocation4], 1
    %531 = vsyncpa %s530, 1
    %532 = vsyncpa [#allocation5], 1
    %s533 = scalar_lea.sflag [#allocation5], 1
    %534 = vsyncpa %s533, 1

</llo_original>
